<compile_context>
chip_gen: v5e
topology: v5e:2x2
jax: 0.10.0
libtpu: 0.0.40
codegen_flags: <defaults>
</compile_context>

<pallas_src>
import jax
import jax.numpy as jnp
from jax.experimental import pallas as pl
from jax.experimental.pallas import tpu as pltpu


def cfg_denoiser_kernel(scales_ref,                  # SMEM [2] f32: (text_cfg, image_cfg)
                        sigma_ref,                   # SMEM [B]  f32
                        z_ref, cc_c_ref, cc_u_ref,   # VMEM [B*C, HW]  (lane dim = HW)
                        ca_c_ref, ca_u_ref,          # VMEM [B*T, D]
                        w_ch_t_ref,                  # VMEM [C_out, C_in]  (= w_ch.T)
                        w_ctx_t_ref,                 # VMEM [C, D]         (= w_ctx.T)
                        out_ref):                    # VMEM [B*C, HW]
    t_cfg = scales_ref[0]
    i_cfg = scales_ref[1]
    # Exact affine fusion of the CFG combine:
    #   out = (t+i)*out_cond + (0.5-t)*out_img + (0.5-i)*out_txt
    w_tc = 0.5 + t_cfg        # coeff of bias(ca_cond)
    w_tu = 0.5 - t_cfg        # coeff of bias(ca_uncond)
    w_ic = 0.5 + i_cfg        # coeff of cc_cond inside the channel mix
    w_iu = 0.5 - i_cfg        # coeff of cc_uncond inside the channel mix

    w_ch_t = w_ch_t_ref[...]    # [C, C]  rows = c_out, cols = c_in
    w_ctx_t = w_ctx_t_ref[...]  # [C, D]

    C = w_ch_t.shape[0]
    B = sigma_ref.shape[0]
    T = ca_c_ref.shape[0] // B

    # 1) fused concat-conditioning mix, one pass over the fully dense
    #    [B*C, HW] tile (2 full vregs at the test shapes).
    x = z_ref[...] + w_ic * cc_c_ref[...] + w_iu * cc_u_ref[...]        # [B*C, HW]

    for b in range(B):          # B tiny & static -> unrolled; no grid overhead
        sigma_b = sigma_ref[b]
        c_in = 1.0 / (sigma_b * sigma_b + 1.0)   # sigma-dependent input scaling

        xb = x[b * C:(b + 1) * C, :]                                     # [C, HW]

        # 1x1 channel mix: C unrolled broadcast-FMAs on the VPU.
        # h[c_out, :] = sum_{c_in} w_ch[c_in, c_out] * xb[c_in, :]
        h = w_ch_t[:, 0:1] * xb[0:1, :]
        for c in range(1, C):
            h = h + w_ch_t[:, c:c + 1] * xb[c:c + 1, :]                  # [C, HW]

        # pooled cross-attention bias, fused across cond/uncond.
        # Only sublane-reduce + lane-reduce; no lane<->sublane transpose.
        ctx = (w_tc * jnp.mean(ca_c_ref[b * T:(b + 1) * T, :], axis=0, keepdims=True)
               + w_tu * jnp.mean(ca_u_ref[b * T:(b + 1) * T, :], axis=0, keepdims=True))  # [1, D]
        bias_col = jnp.sum(w_ctx_t * ctx, axis=1, keepdims=True)          # [C, 1]

        # lane-dense store (sublane-sliced, lanes fully unmasked)
        out_ref[b * C:(b + 1) * C, :] = (c_in * h + bias_col).astype(out_ref.dtype)


def cfg_denoiser_forward(z_nchw, sigma, cond, uncond,
                         text_cfg_scale, image_cfg_scale, params):
    """z_nchw: [B, C, H, W]; sigma: [B]; cond/uncond dicts as in the PyTorch module."""
    w_ch, w_ctx = params
    B, C, H, Wsp = z_nchw.shape
    HW = H * Wsp
    T, D = cond['c_crossattn'][0].shape[1:]

    # NCHW -> [B*C, H*W] and [B,T,D] -> [B*T, D] are pure (free) reshapes of
    # contiguous arrays: no transpose, no extra HBM pass.  The kernel sees
    # full-sublane (8) x lane-dense (256) tiles.
    z = z_nchw.reshape(B * C, HW)
    cc_c = cond['c_concat'][0].reshape(B * C, HW)
    cc_u = uncond['c_concat'][0].reshape(B * C, HW)
    ca_c = cond['c_crossattn'][0].reshape(B * T, D)
    ca_u = uncond['c_crossattn'][0].reshape(B * T, D)

    scales = jnp.asarray([text_cfg_scale, image_cfg_scale], jnp.float32)
    sigma_f32 = sigma.astype(jnp.float32)
    w_ch_t = w_ch.T.astype(jnp.float32)               # [C_out, C_in]
    w_ctx_t = w_ctx.T.astype(jnp.float32)             # [C, D]

    vmem = pl.BlockSpec(memory_space=pltpu.MemorySpace.VMEM)
    smem = pl.BlockSpec(memory_space=pltpu.MemorySpace.SMEM)

    out_rows = pl.pallas_call(
        cfg_denoiser_kernel,
        out_shape=jax.ShapeDtypeStruct((B * C, HW), jnp.float32),
        # single invocation (no grid): everything stays resident in VMEM.
        in_specs=[smem, smem, vmem, vmem, vmem, vmem, vmem, vmem, vmem],
        out_specs=vmem,
    )(scales, sigma_f32, z, cc_c, cc_u, ca_c, ca_u, w_ch_t, w_ctx_t)

    # back to NCHW (free reshape) to match the PyTorch output convention
    return out_rows.reshape(B, C, H, Wsp)


# ------------------------- pure-JAX reference (unfused) ----------------------
def _inner_model_ref(z, sigma, ca, cc, w_ch, w_ctx):
    c_in = 1.0 / (sigma ** 2 + 1.0)                        # [B]
    h = jnp.einsum('bchw,cd->bdhw', z + cc, w_ch)
    bias = jnp.mean(ca, axis=1) @ w_ctx                    # [B, C]
    return h * c_in[:, None, None, None] + bias[:, :, None, None]


def cfg_denoiser_ref(z, sigma, cond, uncond, tcs, ics, params):
    w_ch, w_ctx = params
    out_cond = _inner_model_ref(z, sigma, cond['c_crossattn'][0], cond['c_concat'][0], w_ch, w_ctx)
    out_img = _inner_model_ref(z, sigma, uncond['c_crossattn'][0], cond['c_concat'][0], w_ch, w_ctx)
    out_txt = _inner_model_ref(z, sigma, cond['c_crossattn'][0], uncond['c_concat'][0], w_ch, w_ctx)
    return (0.5 * (out_img + out_txt)
            + tcs * (out_cond - out_img)
            + ics * (out_cond - out_txt))


# TODO(synk): hf_guidance path (input_image is not None) requires autograd through a
# VAE decode plus FFT/Sobel high-frequency losses — no clean Pallas equivalent; omitted.

if __name__ == "__main__":
    B, C, H, W = 2, 4, 16, 16     # latent shape
    T, D = 8, 32                  # cross-attention tokens / context dim
    text_cfg_scale, image_cfg_scale = 7.5, 1.5

    key = jax.random.PRNGKey(0)
    k = jax.random.split(key, 7)
    z = jax.random.normal(k[0], (B, C, H, W), jnp.float32)
    sigma = jnp.abs(jax.random.normal(k[1], (B,), jnp.float32)) + 0.5
    cond = {'c_crossattn': [jax.random.normal(k[2], (B, T, D), jnp.float32)],
            'c_concat': [jax.random.normal(k[3], (B, C, H, W), jnp.float32)]}
    uncond = {'c_crossattn': [jax.random.normal(k[4], (B, T, D), jnp.float32)],
              'c_concat': [jnp.zeros((B, C, H, W), jnp.float32)]}
    # deterministic synthetic inner-model parameters
    w_ch = jax.random.normal(k[5], (C, C), jnp.float32) * 0.2
    w_ctx = jax.random.normal(k[6], (D, C), jnp.float32) * 0.1
    params = (w_ch, w_ctx)

    out = cfg_denoiser_forward(z, sigma, cond, uncond,
                               text_cfg_scale, image_cfg_scale, params)
    out = jax.block_until_ready(out)

    ref = cfg_denoiser_ref(z, sigma, cond, uncond,
                           text_cfg_scale, image_cfg_scale, params)
    assert out.shape == (B, C, H, W)
    assert jnp.allclose(out, ref, atol=1e-3, rtol=1e-3), "mismatch vs reference"
    print("KERNEL_OK")
</pallas_src>

<mosaic_0001>
module attributes {stable_mosaic.version = 11 : i64} {
  func.func @cfg_denoiser_kernel(%arg0: memref<2xf32, #tpu.memory_space<smem>>, %arg1: memref<2xf32, #tpu.memory_space<smem>>, %arg2: memref<8x256xf32, #tpu.memory_space<vmem>>, %arg3: memref<8x256xf32, #tpu.memory_space<vmem>>, %arg4: memref<8x256xf32, #tpu.memory_space<vmem>>, %arg5: memref<16x32xf32, #tpu.memory_space<vmem>>, %arg6: memref<16x32xf32, #tpu.memory_space<vmem>>, %arg7: memref<4x4xf32, #tpu.memory_space<vmem>>, %arg8: memref<4x32xf32, #tpu.memory_space<vmem>>, %arg9: memref<8x256xf32, #tpu.memory_space<vmem>>) attributes {dimension_semantics = [], scalar_prefetch = 0 : i64, scratch_operands = 0 : i64, tpu.core_type = #tpu.core_type<tc>} {
    %c0 = arith.constant 0 : index
    %0 = memref.load %arg0[%c0] : memref<2xf32, #tpu.memory_space<smem>>
    %c1 = arith.constant 1 : index
    %1 = memref.load %arg0[%c1] : memref<2xf32, #tpu.memory_space<smem>>
    %cst = arith.constant 5.000000e-01 : f32
    %2 = arith.addf %cst, %0 : f32
    %cst_0 = arith.constant 5.000000e-01 : f32
    %3 = arith.subf %cst_0, %0 : f32
    %cst_1 = arith.constant 5.000000e-01 : f32
    %4 = arith.addf %cst_1, %1 : f32
    %cst_2 = arith.constant 5.000000e-01 : f32
    %5 = arith.subf %cst_2, %1 : f32
    %c0_3 = arith.constant 0 : index
    %c0_4 = arith.constant 0 : index
    %6 = vector.load %arg7[%c0_3, %c0_4] : memref<4x4xf32, #tpu.memory_space<vmem>>, vector<4x4xf32>
    %c0_5 = arith.constant 0 : index
    %c0_6 = arith.constant 0 : index
    %7 = vector.load %arg8[%c0_5, %c0_6] : memref<4x32xf32, #tpu.memory_space<vmem>>, vector<4x32xf32>
    %c0_7 = arith.constant 0 : index
    %c0_8 = arith.constant 0 : index
    %8 = vector.load %arg2[%c0_7, %c0_8] : memref<8x256xf32, #tpu.memory_space<vmem>>, vector<8x256xf32>
    %c0_9 = arith.constant 0 : index
    %c0_10 = arith.constant 0 : index
    %9 = vector.load %arg3[%c0_9, %c0_10] : memref<8x256xf32, #tpu.memory_space<vmem>>, vector<8x256xf32>
    %10 = vector.broadcast %4 : f32 to vector<8x256xf32>
    %11 = arith.mulf %10, %9 : vector<8x256xf32>
    %12 = arith.addf %8, %11 : vector<8x256xf32>
    %c0_11 = arith.constant 0 : index
    %c0_12 = arith.constant 0 : index
    %13 = vector.load %arg4[%c0_11, %c0_12] : memref<8x256xf32, #tpu.memory_space<vmem>>, vector<8x256xf32>
    %14 = vector.broadcast %5 : f32 to vector<8x256xf32>
    %15 = arith.mulf %14, %13 : vector<8x256xf32>
    %16 = arith.addf %12, %15 : vector<8x256xf32>
    %c0_13 = arith.constant 0 : index
    %17 = memref.load %arg1[%c0_13] : memref<2xf32, #tpu.memory_space<smem>>
    %18 = arith.mulf %17, %17 : f32
    %cst_14 = arith.constant 1.000000e+00 : f32
    %19 = arith.addf %18, %cst_14 : f32
    %cst_15 = arith.constant 1.000000e+00 : f32
    %20 = arith.divf %cst_15, %19 : f32
    %21 = vector.extract_strided_slice %16 {offsets = [0, 0], sizes = [4, 256], strides = [1, 1]} : vector<8x256xf32> to vector<4x256xf32>
    %22 = vector.extract_strided_slice %6 {offsets = [0, 0], sizes = [4, 1], strides = [1, 1]} : vector<4x4xf32> to vector<4x1xf32>
    %23 = vector.extract_strided_slice %21 {offsets = [0, 0], sizes = [1, 256], strides = [1, 1]} : vector<4x256xf32> to vector<1x256xf32>
    %24 = vector.broadcast %22 : vector<4x1xf32> to vector<4x256xf32>
    %25 = vector.broadcast %23 : vector<1x256xf32> to vector<4x256xf32>
    %26 = arith.mulf %24, %25 : vector<4x256xf32>
    %27 = vector.extract_strided_slice %6 {offsets = [0, 1], sizes = [4, 1], strides = [1, 1]} : vector<4x4xf32> to vector<4x1xf32>
    %28 = vector.extract_strided_slice %21 {offsets = [1, 0], sizes = [1, 256], strides = [1, 1]} : vector<4x256xf32> to vector<1x256xf32>
    %29 = vector.broadcast %27 : vector<4x1xf32> to vector<4x256xf32>
    %30 = vector.broadcast %28 : vector<1x256xf32> to vector<4x256xf32>
    %31 = arith.mulf %29, %30 : vector<4x256xf32>
    %32 = arith.addf %26, %31 : vector<4x256xf32>
    %33 = vector.extract_strided_slice %6 {offsets = [0, 2], sizes = [4, 1], strides = [1, 1]} : vector<4x4xf32> to vector<4x1xf32>
    %34 = vector.extract_strided_slice %21 {offsets = [2, 0], sizes = [1, 256], strides = [1, 1]} : vector<4x256xf32> to vector<1x256xf32>
    %35 = vector.broadcast %33 : vector<4x1xf32> to vector<4x256xf32>
    %36 = vector.broadcast %34 : vector<1x256xf32> to vector<4x256xf32>
    %37 = arith.mulf %35, %36 : vector<4x256xf32>
    %38 = arith.addf %32, %37 : vector<4x256xf32>
    %39 = vector.extract_strided_slice %6 {offsets = [0, 3], sizes = [4, 1], strides = [1, 1]} : vector<4x4xf32> to vector<4x1xf32>
    %40 = vector.extract_strided_slice %21 {offsets = [3, 0], sizes = [1, 256], strides = [1, 1]} : vector<4x256xf32> to vector<1x256xf32>
    %41 = vector.broadcast %39 : vector<4x1xf32> to vector<4x256xf32>
    %42 = vector.broadcast %40 : vector<1x256xf32> to vector<4x256xf32>
    %43 = arith.mulf %41, %42 : vector<4x256xf32>
    %44 = arith.addf %38, %43 : vector<4x256xf32>
    %c0_16 = arith.constant 0 : index
    %c0_17 = arith.constant 0 : index
    %45 = vector.load %arg5[%c0_16, %c0_17] : memref<16x32xf32, #tpu.memory_space<vmem>>, vector<8x32xf32>
    %cst_18 = arith.constant dense<0.000000e+00> : vector<32xf32>
    %46 = vector.multi_reduction <add>, %45, %cst_18 [0] : vector<8x32xf32> to vector<32xf32>
    %47 = vector.shape_cast %46 : vector<32xf32> to vector<1x32xf32>
    %cst_19 = arith.constant 8.000000e+00 : f32
    %48 = vector.broadcast %cst_19 : f32 to vector<1x32xf32>
    %49 = arith.divf %47, %48 : vector<1x32xf32>
    %50 = vector.broadcast %2 : f32 to vector<1x32xf32>
    %51 = arith.mulf %50, %49 : vector<1x32xf32>
    %c0_20 = arith.constant 0 : index
    %c0_21 = arith.constant 0 : index
    %52 = vector.load %arg6[%c0_20, %c0_21] : memref<16x32xf32, #tpu.memory_space<vmem>>, vector<8x32xf32>
    %cst_22 = arith.constant dense<0.000000e+00> : vector<32xf32>
    %53 = vector.multi_reduction <add>, %52, %cst_22 [0] : vector<8x32xf32> to vector<32xf32>
    %54 = vector.shape_cast %53 : vector<32xf32> to vector<1x32xf32>
    %cst_23 = arith.constant 8.000000e+00 : f32
    %55 = vector.broadcast %cst_23 : f32 to vector<1x32xf32>
    %56 = arith.divf %54, %55 : vector<1x32xf32>
    %57 = vector.broadcast %3 : f32 to vector<1x32xf32>
    %58 = arith.mulf %57, %56 : vector<1x32xf32>
    %59 = arith.addf %51, %58 : vector<1x32xf32>
    %60 = vector.broadcast %59 : vector<1x32xf32> to vector<4x32xf32>
    %61 = arith.mulf %7, %60 : vector<4x32xf32>
    %cst_24 = arith.constant dense<0.000000e+00> : vector<4xf32>
    %62 = vector.multi_reduction <add>, %61, %cst_24 [1] : vector<4x32xf32> to vector<4xf32>
    %63 = vector.shape_cast %62 : vector<4xf32> to vector<4x1xf32>
    %64 = vector.broadcast %20 : f32 to vector<4x256xf32>
    %65 = arith.mulf %64, %44 : vector<4x256xf32>
    %66 = vector.broadcast %63 : vector<4x1xf32> to vector<4x256xf32>
    %67 = arith.addf %65, %66 : vector<4x256xf32>
    %c0_25 = arith.constant 0 : index
    %c0_26 = arith.constant 0 : index
    %68 = vector.load %arg9[%c0_25, %c0_26] : memref<8x256xf32, #tpu.memory_space<vmem>>, vector<4x256xf32>
    tpu.vector_store %arg9[%c0_25, %c0_26], %67 {strides = array<i32>} : memref<8x256xf32, #tpu.memory_space<vmem>>, vector<4x256xf32>,
    %c1_27 = arith.constant 1 : index
    %69 = memref.load %arg1[%c1_27] : memref<2xf32, #tpu.memory_space<smem>>
    %70 = arith.mulf %69, %69 : f32
    %cst_28 = arith.constant 1.000000e+00 : f32
    %71 = arith.addf %70, %cst_28 : f32
    %cst_29 = arith.constant 1.000000e+00 : f32
    %72 = arith.divf %cst_29, %71 : f32
    %73 = vector.extract_strided_slice %16 {offsets = [4, 0], sizes = [4, 256], strides = [1, 1]} : vector<8x256xf32> to vector<4x256xf32>
    %74 = vector.extract_strided_slice %6 {offsets = [0, 0], sizes = [4, 1], strides = [1, 1]} : vector<4x4xf32> to vector<4x1xf32>
    %75 = vector.extract_strided_slice %73 {offsets = [0, 0], sizes = [1, 256], strides = [1, 1]} : vector<4x256xf32> to vector<1x256xf32>
    %76 = vector.broadcast %74 : vector<4x1xf32> to vector<4x256xf32>
    %77 = vector.broadcast %75 : vector<1x256xf32> to vector<4x256xf32>
    %78 = arith.mulf %76, %77 : vector<4x256xf32>
    %79 = vector.extract_strided_slice %6 {offsets = [0, 1], sizes = [4, 1], strides = [1, 1]} : vector<4x4xf32> to vector<4x1xf32>
    %80 = vector.extract_strided_slice %73 {offsets = [1, 0], sizes = [1, 256], strides = [1, 1]} : vector<4x256xf32> to vector<1x256xf32>
    %81 = vector.broadcast %79 : vector<4x1xf32> to vector<4x256xf32>
    %82 = vector.broadcast %80 : vector<1x256xf32> to vector<4x256xf32>
    %83 = arith.mulf %81, %82 : vector<4x256xf32>
    %84 = arith.addf %78, %83 : vector<4x256xf32>
    %85 = vector.extract_strided_slice %6 {offsets = [0, 2], sizes = [4, 1], strides = [1, 1]} : vector<4x4xf32> to vector<4x1xf32>
    %86 = vector.extract_strided_slice %73 {offsets = [2, 0], sizes = [1, 256], strides = [1, 1]} : vector<4x256xf32> to vector<1x256xf32>
    %87 = vector.broadcast %85 : vector<4x1xf32> to vector<4x256xf32>
    %88 = vector.broadcast %86 : vector<1x256xf32> to vector<4x256xf32>
    %89 = arith.mulf %87, %88 : vector<4x256xf32>
    %90 = arith.addf %84, %89 : vector<4x256xf32>
    %91 = vector.extract_strided_slice %6 {offsets = [0, 3], sizes = [4, 1], strides = [1, 1]} : vector<4x4xf32> to vector<4x1xf32>
    %92 = vector.extract_strided_slice %73 {offsets = [3, 0], sizes = [1, 256], strides = [1, 1]} : vector<4x256xf32> to vector<1x256xf32>
    %93 = vector.broadcast %91 : vector<4x1xf32> to vector<4x256xf32>
    %94 = vector.broadcast %92 : vector<1x256xf32> to vector<4x256xf32>
    %95 = arith.mulf %93, %94 : vector<4x256xf32>
    %96 = arith.addf %90, %95 : vector<4x256xf32>
    %c8 = arith.constant 8 : index
    %c0_30 = arith.constant 0 : index
    %97 = vector.load %arg5[%c8, %c0_30] : memref<16x32xf32, #tpu.memory_space<vmem>>, vector<8x32xf32>
    %cst_31 = arith.constant dense<0.000000e+00> : vector<32xf32>
    %98 = vector.multi_reduction <add>, %97, %cst_31 [0] : vector<8x32xf32> to vector<32xf32>
    %99 = vector.shape_cast %98 : vector<32xf32> to vector<1x32xf32>
    %cst_32 = arith.constant 8.000000e+00 : f32
    %100 = vector.broadcast %cst_32 : f32 to vector<1x32xf32>
    %101 = arith.divf %99, %100 : vector<1x32xf32>
    %102 = vector.broadcast %2 : f32 to vector<1x32xf32>
    %103 = arith.mulf %102, %101 : vector<1x32xf32>
    %c8_33 = arith.constant 8 : index
    %c0_34 = arith.constant 0 : index
    %104 = vector.load %arg6[%c8_33, %c0_34] : memref<16x32xf32, #tpu.memory_space<vmem>>, vector<8x32xf32>
    %cst_35 = arith.constant dense<0.000000e+00> : vector<32xf32>
    %105 = vector.multi_reduction <add>, %104, %cst_35 [0] : vector<8x32xf32> to vector<32xf32>
    %106 = vector.shape_cast %105 : vector<32xf32> to vector<1x32xf32>
    %cst_36 = arith.constant 8.000000e+00 : f32
    %107 = vector.broadcast %cst_36 : f32 to vector<1x32xf32>
    %108 = arith.divf %106, %107 : vector<1x32xf32>
    %109 = vector.broadcast %3 : f32 to vector<1x32xf32>
    %110 = arith.mulf %109, %108 : vector<1x32xf32>
    %111 = arith.addf %103, %110 : vector<1x32xf32>
    %112 = vector.broadcast %111 : vector<1x32xf32> to vector<4x32xf32>
    %113 = arith.mulf %7, %112 : vector<4x32xf32>
    %cst_37 = arith.constant dense<0.000000e+00> : vector<4xf32>
    %114 = vector.multi_reduction <add>, %113, %cst_37 [1] : vector<4x32xf32> to vector<4xf32>
    %115 = vector.shape_cast %114 : vector<4xf32> to vector<4x1xf32>
    %116 = vector.broadcast %72 : f32 to vector<4x256xf32>
    %117 = arith.mulf %116, %96 : vector<4x256xf32>
    %118 = vector.broadcast %115 : vector<4x1xf32> to vector<4x256xf32>
    %119 = arith.addf %117, %118 : vector<4x256xf32>
    %c4 = arith.constant 4 : index
    %c0_38 = arith.constant 0 : index
    %120 = vector.load %arg9[%c4, %c0_38] : memref<8x256xf32, #tpu.memory_space<vmem>>, vector<4x256xf32>
    tpu.vector_store %arg9[%c4, %c0_38], %119 {strides = array<i32>} : memref<8x256xf32, #tpu.memory_space<vmem>>, vector<4x256xf32>,
    return
  }
}

</mosaic_0001>

<llo_original>
// kernel: tpu_custom_call.1
$region0: #{tpu_custom_call.1}
  #allocation0 [shape = 'u32[]', space=smem, size = 0x4, offset = 0x4, fixed_abs, tag = 'smem constant byte address 0x4 - core index']
  #allocation1 [shape = 'u32[72,128]{1,0:T(1,128)}', space=vmem, size = 0x9000, scoped, tag = 'internal scratch']
  %s0 = inlined_call_operand.hbm [shape: f32[2], index: 0, kind: input, shape index: {}]
  %s1 = inlined_call_operand.hbm [shape: f32[2], index: 1, kind: input, shape index: {}]
  %s2 = inlined_call_operand.hbm [shape: f32[8,256], index: 2, kind: input, shape index: {}]
  %s3 = inlined_call_operand.hbm [shape: f32[8,256], index: 3, kind: input, shape index: {}]
  %s4 = inlined_call_operand.hbm [shape: f32[8,256], index: 4, kind: input, shape index: {}]
  %s5 = inlined_call_operand.hbm [shape: f32[16,32], index: 5, kind: input, shape index: {}]
  %s6 = inlined_call_operand.hbm [shape: f32[16,32], index: 6, kind: input, shape index: {}]
  %s7 = inlined_call_operand.vmem [shape: f32[4,4], index: 7, kind: input, shape index: {}]
  %s8 = inlined_call_operand.hbm [shape: f32[4,32], index: 8, kind: input, shape index: {}]
  %s9 = inlined_call_operand.hbm [shape: f32[8,256], index: 9, kind: output, shape index: {}]
  %s10 = sld [smem:[#allocation0]]
  $region78: #{tpu_custom_call.1} parent=0
    _
  %s12 = ssub.s32 1, %s10
  %s13 = scalar_select 0, %s12, %s10
  $region1: #{tpu_custom_call.1} parent=0
    #allocation2 [shape = 'u8[512]{0}', space=smem, size = 0x200, scoped, tag = 'input window, operand 0, single buffered']
    #allocation3 [shape = 's32[1]{0}', space=sflag, size = 0x4, scoped, tag = 'scoped memory for tpu_custom_call.1']
    #allocation4 [shape = 's32[1]{0}', space=sflag, size = 0x4, scoped, tag = 'scoped memory for tpu_custom_call.1']
    #allocation5 [shape = 's32[1]{0}', space=sflag, size = 0x4, scoped, tag = 'scoped memory for tpu_custom_call.1']
    #allocation6 [shape = 'u8[512]{0}', space=smem, size = 0x200, scoped, tag = 'input window, operand 1, single buffered']
    #allocation7 [shape = 's32[1]{0}', space=sflag, size = 0x4, scoped, tag = 'scoped memory for tpu_custom_call.1']
    #allocation8 [shape = 'u8[8192]{0}', space=vmem, size = 0x2000, scoped, tag = 'input window, operand 2, single buffered']
    #allocation9 [shape = 'u8[8192]{0}', space=vmem, size = 0x2000, scoped, tag = 'input window, operand 3, single buffered']
    #allocation10 [shape = 's32[1]{0}', space=sflag, size = 0x4, scoped, tag = 'scoped memory for tpu_custom_call.1']
    #allocation11 [shape = 'u8[8192]{0}', space=vmem, size = 0x2000, scoped, tag = 'input window, operand 4, single buffered']
    #allocation12 [shape = 'u8[8192]{0}', space=vmem, size = 0x2000, scoped, tag = 'input window, operand 5, single buffered']
    #allocation13 [shape = 's32[1]{0}', space=sflag, size = 0x4, scoped, tag = 'scoped memory for tpu_custom_call.1']
    #allocation14 [shape = 'u8[8192]{0}', space=vmem, size = 0x2000, scoped, tag = 'input window, operand 6, single buffered']
    #allocation15 [shape = 'u8[2048]{0}', space=vmem, size = 0x800, scoped, tag = 'input window, operand 8, single buffered']
    #allocation16 [shape = 's32[1]{0}', space=sflag, size = 0x4, scoped, tag = 'scoped memory for tpu_custom_call.1']
    #allocation17 [shape = 'u8[8192]{0}', space=vmem, size = 0x2000, scoped, tag = 'output window, operand 0, single buffered']
    %14 = vsyncpa [#allocation5], 0
    %15 = vsyncpa [#allocation7], 0
    %16 = vsyncpa [#allocation3], 0
    %17 = vsyncpa [#allocation10], 0
    %18 = vsyncpa [#allocation13], 0
    %19 = vsyncpa [#allocation16], 0
    %20 = vsyncpa [#allocation4], 0
    // Predicated region
    $region2: #{tpu_custom_call.1} parent=1 // pred_check
      _
    $region3: #{tpu_custom_call.1} parent=1 // pred_check_branch
      %22 = sbr.rel (0) target = $region5
    $region4: #{tpu_custom_call.1} parent=1 // pred_region
      %24 = vsyncadd [#allocation5], 0
      %s26 = sshll.u32 %s0, 4
      %s27 = int_to_ptr.hbm [resolvable:$true] %s26
      %29 = dma.hbm_to_smem %s27, 16, [#allocation2], [#allocation5]
    $region5: #{tpu_custom_call.1} parent=1 // pred_fallthru
      _
    // Predicated region
    $region6: #{tpu_custom_call.1} parent=1 // pred_check
      _
    $region7: #{tpu_custom_call.1} parent=1 // pred_check_branch
      %31 = sbr.rel (0) target = $region9
    $region8: #{tpu_custom_call.1} parent=1 // pred_region
      %33 = vsyncadd [#allocation7], 0
      %s35 = sshll.u32 %s1, 4
      %s36 = int_to_ptr.hbm [resolvable:$true] %s35
      %38 = dma.hbm_to_smem %s36, 16, [#allocation6], [#allocation7]
    $region9: #{tpu_custom_call.1} parent=1 // pred_fallthru
      _
    // Predicated region
    $region10: #{tpu_custom_call.1} parent=1 // pred_check
      _
    $region11: #{tpu_custom_call.1} parent=1 // pred_check_branch
      %40 = sbr.rel (0) target = $region13
    $region12: #{tpu_custom_call.1} parent=1 // pred_region
      %42 = vsyncadd [#allocation3], 0
      %s44 = sshll.u32 %s2, 4
      %s45 = int_to_ptr.hbm [resolvable:$true] %s44
      %s46 = sshll.u32 [#allocation8], 4
      %s47 = int_to_ptr.vmem [resolvable:$true] %s46
      %49 = dma.hbm_to_vmem [thread:$0]  %s45, 256, %s47, [#allocation3]
    $region13: #{tpu_custom_call.1} parent=1 // pred_fallthru
      _
    // Predicated region
    $region14: #{tpu_custom_call.1} parent=1 // pred_check
      _
    $region15: #{tpu_custom_call.1} parent=1 // pred_check_branch
      %51 = sbr.rel (0) target = $region17
    $region16: #{tpu_custom_call.1} parent=1 // pred_region
      %53 = vsyncadd [#allocation10], 0
      %s55 = sshll.u32 %s3, 4
      %s56 = int_to_ptr.hbm [resolvable:$true] %s55
      %s57 = sshll.u32 [#allocation9], 4
      %s58 = int_to_ptr.vmem [resolvable:$true] %s57
      %60 = dma.hbm_to_vmem [thread:$0]  %s56, 256, %s58, [#allocation10]
    $region17: #{tpu_custom_call.1} parent=1 // pred_fallthru
      _
    // Predicated region
    $region18: #{tpu_custom_call.1} parent=1 // pred_check
      _
    $region19: #{tpu_custom_call.1} parent=1 // pred_check_branch
      %62 = sbr.rel (0) target = $region21
    $region20: #{tpu_custom_call.1} parent=1 // pred_region
      %64 = vsyncadd [#allocation10], 0
      %s66 = sshll.u32 %s4, 4
      %s67 = int_to_ptr.hbm [resolvable:$true] %s66
      %s68 = sshll.u32 [#allocation11], 4
      %s69 = int_to_ptr.vmem [resolvable:$true] %s68
      %71 = dma.hbm_to_vmem [thread:$0]  %s67, 256, %s69, [#allocation10]
    $region21: #{tpu_custom_call.1} parent=1 // pred_fallthru
      _
    // Predicated region
    $region22: #{tpu_custom_call.1} parent=1 // pred_check
      _
    $region23: #{tpu_custom_call.1} parent=1 // pred_check_branch
      %73 = sbr.rel (0) target = $region25
    $region24: #{tpu_custom_call.1} parent=1 // pred_region
      %75 = vsyncadd [#allocation13], 0
      %s76 = sshll.u32 %s5, 4
      %s77 = int_to_ptr.hbm [resolvable:$true] %s76
      %s78 = sshll.u32 [#allocation12], 4
      %s79 = int_to_ptr.vmem [resolvable:$true] %s78
      %84 = dma.hbm_to_vmem [thread:$0]  %s77, 256, %s79, [#allocation13], 128, 128, 8
    $region25: #{tpu_custom_call.1} parent=1 // pred_fallthru
      _
    // Predicated region
    $region26: #{tpu_custom_call.1} parent=1 // pred_check
      _
    $region27: #{tpu_custom_call.1} parent=1 // pred_check_branch
      %86 = sbr.rel (0) target = $region29
    $region28: #{tpu_custom_call.1} parent=1 // pred_region
      %88 = vsyncadd [#allocation13], 0
      %s89 = sshll.u32 %s6, 4
      %s90 = int_to_ptr.hbm [resolvable:$true] %s89
      %s91 = sshll.u32 [#allocation14], 4
      %s92 = int_to_ptr.vmem [resolvable:$true] %s91
      %97 = dma.hbm_to_vmem [thread:$0]  %s90, 256, %s92, [#allocation13], 128, 128, 8
    $region29: #{tpu_custom_call.1} parent=1 // pred_fallthru
      _
    // Predicated region
    $region30: #{tpu_custom_call.1} parent=1 // pred_check
      _
    $region31: #{tpu_custom_call.1} parent=1 // pred_check_branch
      %99 = sbr.rel (0) target = $region33
    $region32: #{tpu_custom_call.1} parent=1 // pred_region
      _
    $region33: #{tpu_custom_call.1} parent=1 // pred_fallthru
      _
    // Predicated region
    $region34: #{tpu_custom_call.1} parent=1 // pred_check
      _
    $region35: #{tpu_custom_call.1} parent=1 // pred_check_branch
      %101 = sbr.rel (0) target = $region37
    $region36: #{tpu_custom_call.1} parent=1 // pred_region
      %103 = vsyncadd [#allocation16], 0
      %s105 = sshll.u32 %s8, 4
      %s106 = int_to_ptr.hbm [resolvable:$true] %s105
      %s107 = sshll.u32 [#allocation15], 4
      %s108 = int_to_ptr.vmem [resolvable:$true] %s107
      %110 = dma.hbm_to_vmem [thread:$0]  %s106, 64, %s108, [#allocation16]
    $region37: #{tpu_custom_call.1} parent=1 // pred_fallthru
      _
    // Predicated region
    $region38: #{tpu_custom_call.1} parent=1 // pred_check
      _
    $region39: #{tpu_custom_call.1} parent=1 // pred_check_branch
      %112 = sbr.rel (0) target = $region41
    $region40: #{tpu_custom_call.1} parent=1 // pred_region
      %114 = dma.done [#allocation5], 16
    $region41: #{tpu_custom_call.1} parent=1 // pred_fallthru
      _
    // Predicated region
    $region42: #{tpu_custom_call.1} parent=1 // pred_check
      _
    $region43: #{tpu_custom_call.1} parent=1 // pred_check_branch
      %116 = sbr.rel (0) target = $region45
    $region44: #{tpu_custom_call.1} parent=1 // pred_region
      %118 = dma.done [#allocation7], 16
    $region45: #{tpu_custom_call.1} parent=1 // pred_fallthru
      _
    // Predicated region
    $region46: #{tpu_custom_call.1} parent=1 // pred_check
      _
    $region47: #{tpu_custom_call.1} parent=1 // pred_check_branch
      %120 = sbr.rel (0) target = $region49
    $region48: #{tpu_custom_call.1} parent=1 // pred_region
      %122 = dma.done [#allocation3], 256
    $region49: #{tpu_custom_call.1} parent=1 // pred_fallthru
      _
    // Predicated region
    $region50: #{tpu_custom_call.1} parent=1 // pred_check
      _
    $region51: #{tpu_custom_call.1} parent=1 // pred_check_branch
      %124 = sbr.rel (0) target = $region53
    $region52: #{tpu_custom_call.1} parent=1 // pred_region
      %126 = dma.done [#allocation10], 256
    $region53: #{tpu_custom_call.1} parent=1 // pred_fallthru
      _
    // Predicated region
    $region54: #{tpu_custom_call.1} parent=1 // pred_check
      _
    $region55: #{tpu_custom_call.1} parent=1 // pred_check_branch
      %128 = sbr.rel (0) target = $region57
    $region56: #{tpu_custom_call.1} parent=1 // pred_region
      %130 = dma.done [#allocation10], 256
    $region57: #{tpu_custom_call.1} parent=1 // pred_fallthru
      _
    // Predicated region
    $region58: #{tpu_custom_call.1} parent=1 // pred_check
      _
    $region59: #{tpu_custom_call.1} parent=1 // pred_check_branch
      %132 = sbr.rel (0) target = $region61
    $region60: #{tpu_custom_call.1} parent=1 // pred_region
      %134 = dma.done [#allocation13], 256
    $region61: #{tpu_custom_call.1} parent=1 // pred_fallthru
      _
    // Predicated region
    $region62: #{tpu_custom_call.1} parent=1 // pred_check
      _
    $region63: #{tpu_custom_call.1} parent=1 // pred_check_branch
      %136 = sbr.rel (0) target = $region65
    $region64: #{tpu_custom_call.1} parent=1 // pred_region
      %138 = dma.done [#allocation13], 256
    $region65: #{tpu_custom_call.1} parent=1 // pred_fallthru
      _
    // Predicated region
    $region66: #{tpu_custom_call.1} parent=1 // pred_check
      _
    $region67: #{tpu_custom_call.1} parent=1 // pred_check_branch
      %140 = sbr.rel (0) target = $region69
    $region68: #{tpu_custom_call.1} parent=1 // pred_region
      %142 = dma.done [#allocation16], 64
    $region69: #{tpu_custom_call.1} parent=1 // pred_fallthru
      _
    %143 = sfence
    %s144 = sld [smem:[#allocation2]]
    %s145 = sld [smem:[#allocation2 + $0x1]]
    %s146 = sadd.f32 %s144, 0.5
    %s147 = ssub.f32 0.5, %s144
    %s148 = sadd.f32 %s145, 0.5
    %s149 = ssub.f32 0.5, %s145
    %v150 = vld [vmem:[%s7] sm:$0xf]
    %v151 = vld [vmem:[#allocation15] sm:$0xf]
    %v152 = vld [vmem:[#allocation8] sm:$0xff]
    %v153 = vld [vmem:[#allocation8 + $0x8] sm:$0xff]
    %v154 = vld [vmem:[#allocation9] sm:$0xff]
    %v155 = vld [vmem:[#allocation9 + $0x8] sm:$0xff]
    %v156 = vstv %s148
    %v157 = vmul.f32 %v156, %v154
    %v158 = vmul.f32 %v156, %v155
    %v159 = vadd.f32 %v152, %v157
    %v160 = vadd.f32 %v153, %v158
    %v161 = vld [vmem:[#allocation11] sm:$0xff]
    %v162 = vld [vmem:[#allocation11 + $0x8] sm:$0xff]
    %v163 = vstv %s149
    %v164 = vmul.f32 %v163, %v161
    %v165 = vmul.f32 %v163, %v162
    %v166 = vadd.f32 %v159, %v164
    %v167 = vadd.f32 %v160, %v165
    %s168 = sld [smem:[#allocation6]]
    %s169 = smul.f32 %s168, %s168
    %s170 = sadd.f32 %s169, 1.0
    %v171 = vstv %s170
    %v172 = vrcp.pop %v171
    %v173 = vmul.f32 %v171, %v172
    %v174 = vsub.f32 1.0, %v173
    %v175 = vmul.f32 %v172, %v174
    %v176 = vadd.f32 %v172, %v175
    %vm177 = vweird.f32 %v171
    %vm178 = vweird.f32 %v172
    %vm179 = vmor %vm177, %vm178
    %v180 = vsel %vm179, %v172, %v176
    %v181 = vand.u32 2147483647, %v171
    %vm182 = vcmp.eq.f32.partialorder %v181, 8.507059e+37
    %v183 = vand.u32 %v171, 2147483648
    %v184 = vor.u32 1.1754944e-38, %v183
    %v185 = vsel %vm182, %v184, %v180
    %s186 = vtos %v185
    %188 = vset.pattern.permute.xlu0 0
    %189 = vperm.xlu0 %188, %v150
    %v190 = vpop.permute.xlu0 %189
    %v192 = vperm.slane %v166, 0
    %v193 = vperm.slane %v167, 0
    %v194 = vmul.f32 %v190, %v192
    %v195 = vmul.f32 %v190, %v193
    %196 = vset.pattern.permute.xlu0 1
    %197 = vperm.xlu0 %196, %v150
    %v198 = vpop.permute.xlu0 %197
    %v200 = vperm.slane %v166, 1
    %v201 = vperm.slane %v167, 1
    %v202 = vmul.f32 %v198, %v200
    %v203 = vmul.f32 %v198, %v201
    %v204 = vadd.f32 %v194, %v202
    %v205 = vadd.f32 %v195, %v203
    %206 = vset.pattern.permute.xlu0 2
    %207 = vperm.xlu0 %206, %v150
    %v208 = vpop.permute.xlu0 %207
    %v210 = vperm.slane %v166, 2
    %v211 = vperm.slane %v167, 2
    %v212 = vmul.f32 %v208, %v210
    %v213 = vmul.f32 %v208, %v211
    %v214 = vadd.f32 %v204, %v212
    %v215 = vadd.f32 %v205, %v213
    %216 = vset.pattern.permute.xlu0 3
    %217 = vperm.xlu0 %216, %v150
    %v218 = vpop.permute.xlu0 %217
    %v220 = vperm.slane %v166, 3
    %v221 = vperm.slane %v167, 3
    %v222 = vmul.f32 %v218, %v220
    %v223 = vmul.f32 %v218, %v221
    %v224 = vadd.f32 %v214, %v222
    %v225 = vadd.f32 %v215, %v223
    %v226 = vld [vmem:[#allocation12] sm:$0xff]
    %vm227 = vcmask 261120
    %v228 = vsel %vm227, %v226, 0.0
    %v229 = vrot.slane %v228, 4
    %v230 = vadd.f32 %v228, %v229
    %v231 = vrot.slane %v230, 2
    %v232 = vadd.f32 %v230, %v231
    %v233 = vrot.slane %v232, 1
    %v234 = vadd.f32 %v232, %v233
    %v235 = vrcp.pop 8.0
    %v236 = vmul.f32 8.0, %v235
    %v237 = vsub.f32 1.0, %v236
    %v238 = vmul.f32 %v235, %v237
    %v239 = vadd.f32 %v235, %v238
    %vm240 = vweird.f32 %v235
    %v241 = vsel %vm240, %v235, %v239
    %v242 = vmul.f32 %v234, %v241
    %v243 = vstv %s146
    %v244 = vmul.f32 %v243, %v242
    %v245 = vld [vmem:[#allocation14] sm:$0xff]
    %v246 = vsel %vm227, %v245, 0.0
    %v247 = vrot.slane %v246, 4
    %v248 = vadd.f32 %v246, %v247
    %v249 = vrot.slane %v248, 2
    %v250 = vadd.f32 %v248, %v249
    %v251 = vrot.slane %v250, 1
    %v252 = vadd.f32 %v250, %v251
    %v253 = vmul.f32 %v252, %v241
    %v254 = vstv %s147
    %v255 = vmul.f32 %v254, %v253
    %v256 = vadd.f32 %v244, %v255
    %v257 = vmul.f32 %v151, %v256
    %vm258 = vcmask 257024
    %v259 = vsel %vm258, %v257, 0.0
    %260 = vadd.xlane.f32.xlu0 %v259
    %v261 = vpop.xlane.xlu0 %260
    %v262 = vstv %s186
    %v263 = vmul.f32 %v262, %v224
    %v264 = vmul.f32 %v262, %v225
    %v265 = vadd.f32 %v263, %v261
    %v266 = vadd.f32 %v264, %v261
    %267 = vst [vmem:[#allocation17] sm:$0xf] %v265
    %268 = vst [vmem:[#allocation17 + $0x8] sm:$0xf] %v266
    %s269 = sld [smem:[#allocation6 + $0x1]]
    %s270 = smul.f32 %s269, %s269
    %s271 = sadd.f32 %s270, 1.0
    %v272 = vstv %s271
    %v273 = vrcp.pop %v272
    %v274 = vmul.f32 %v272, %v273
    %v275 = vsub.f32 1.0, %v274
    %v276 = vmul.f32 %v273, %v275
    %v277 = vadd.f32 %v273, %v276
    %vm278 = vweird.f32 %v272
    %vm279 = vweird.f32 %v273
    %vm280 = vmor %vm278, %vm279
    %v281 = vsel %vm280, %v273, %v277
    %v282 = vand.u32 2147483647, %v272
    %vm283 = vcmp.eq.f32.partialorder %v282, 8.507059e+37
    %v284 = vand.u32 %v272, 2147483648
    %v285 = vor.u32 1.1754944e-38, %v284
    %v286 = vsel %vm283, %v285, %v281
    %s287 = vtos %v286
    %v288 = vperm.slane %v166, 4
    %v289 = vperm.slane %v167, 4
    %v290 = vmul.f32 %v190, %v288
    %v291 = vmul.f32 %v190, %v289
    %v292 = vperm.slane %v166, 5
    %v293 = vperm.slane %v167, 5
    %v294 = vmul.f32 %v198, %v292
    %v295 = vmul.f32 %v198, %v293
    %v296 = vadd.f32 %v290, %v294
    %v297 = vadd.f32 %v291, %v295
    %v298 = vperm.slane %v166, 6
    %v299 = vperm.slane %v167, 6
    %v300 = vmul.f32 %v208, %v298
    %v301 = vmul.f32 %v208, %v299
    %v302 = vadd.f32 %v296, %v300
    %v303 = vadd.f32 %v297, %v301
    %v304 = vperm.slane %v166, 7
    %v305 = vperm.slane %v167, 7
    %v306 = vmul.f32 %v218, %v304
    %v307 = vmul.f32 %v218, %v305
    %v308 = vadd.f32 %v302, %v306
    %v309 = vadd.f32 %v303, %v307
    %v310 = vld [vmem:[#allocation12 + $0x8] sm:$0xff]
    %v311 = vsel %vm227, %v310, 0.0
    %v312 = vrot.slane %v311, 4
    %v313 = vadd.f32 %v311, %v312
    %v314 = vrot.slane %v313, 2
    %v315 = vadd.f32 %v313, %v314
    %v316 = vrot.slane %v315, 1
    %v317 = vadd.f32 %v315, %v316
    %v318 = vmul.f32 %v317, %v241
    %v319 = vmul.f32 %v243, %v318
    %v320 = vld [vmem:[#allocation14 + $0x8] sm:$0xff]
    %v321 = vsel %vm227, %v320, 0.0
    %v322 = vrot.slane %v321, 4
    %v323 = vadd.f32 %v321, %v322
    %v324 = vrot.slane %v323, 2
    %v325 = vadd.f32 %v323, %v324
    %v326 = vrot.slane %v325, 1
    %v327 = vadd.f32 %v325, %v326
    %v328 = vmul.f32 %v327, %v241
    %v329 = vmul.f32 %v254, %v328
    %v330 = vadd.f32 %v319, %v329
    %v331 = vmul.f32 %v151, %v330
    %v332 = vsel %vm258, %v331, 0.0
    %333 = vadd.xlane.f32.xlu0 %v332
    %v334 = vpop.xlane.xlu0 %333
    %v335 = vstv %s287
    %v336 = vmul.f32 %v335, %v308
    %v337 = vmul.f32 %v335, %v309
    %v338 = vadd.f32 %v336, %v334
    %v339 = vadd.f32 %v337, %v334
    %v342 = vrot.slane %v338, 4
    %v343 = vrot.slane %v339, 4
    %346 = vst [vmem:[#allocation17] sm:$0xf0] %v342
    %347 = vst [vmem:[#allocation17 + $0x8] sm:$0xf0] %v343
    // Predicated region
    $region70: #{tpu_custom_call.1} parent=1 // pred_check
      _
    $region71: #{tpu_custom_call.1} parent=1 // pred_check_branch
      %349 = sbr.rel (0) target = $region73
    $region72: #{tpu_custom_call.1} parent=1 // pred_region
      %351 = vsyncadd [#allocation4], 0
      %s353 = sshll.u32 [#allocation17], 4
      %s354 = int_to_ptr.vmem [resolvable:$true] %s353
      %s355 = sshll.u32 %s9, 4
      %s356 = int_to_ptr.hbm [resolvable:$true] %s355
      %358 = dma.vmem_to_hbm [thread:$0]  %s354, 256, %s356, [#allocation4]
    $region73: #{tpu_custom_call.1} parent=1 // pred_fallthru
      _
    // Predicated region
    $region74: #{tpu_custom_call.1} parent=1 // pred_check
      _
    $region75: #{tpu_custom_call.1} parent=1 // pred_check_branch
      %360 = sbr.rel (0) target = $region77
    $region76: #{tpu_custom_call.1} parent=1 // pred_region
      %362 = dma.done [#allocation4], 256
    $region77: #{tpu_custom_call.1} parent=1 // pred_fallthru
      _
    %363 = vsyncpa [#allocation3], 1
    %364 = vsyncpa [#allocation10], 1
    %365 = vsyncpa [#allocation13], 1
    %366 = vsyncpa [#allocation16], 1
    %367 = vsyncpa [#allocation4], 1
    %368 = vsyncpa [#allocation5], 1
    %369 = vsyncpa [#allocation7], 1

</llo_original>
